<compile_context>
chip_gen: v7x
topology: tpu7x:2x2x1
jax: 0.10.0
libtpu: 0.0.40
codegen_flags: <defaults>
</compile_context>

<pallas_src>
import functools
import math

import numpy as np
import jax
import jax.numpy as jnp
from jax.experimental import pallas as pl
from jax.experimental.pallas import tpu as pltpu


COMPUTE_DTYPE = jnp.bfloat16     # MXU input / activation dtype


def _pick_tile(dim, candidates):
    """Largest candidate tile that divides dim, else the full dim.

    Candidates are 128/256/512 multiples so tiled blocks always satisfy the
    (8,128) constraint; a non-dividing dim falls back to a full-extent block
    (fine at the small demo shapes; real DiffSinger dims are 128-multiples).
    """
    for c in candidates:
        if dim % c == 0:
            return c
    return dim


# ---------------------------------------------------------------------------
# Pallas kernels
# ---------------------------------------------------------------------------

def _linear_kernel(x_ref, w_ref, b_ref, o_ref, acc_ref, *, act):
    """Tiled [tm,tk] @ [tk,tn] with f32 VMEM accumulator over the K grid axis."""
    @pl.when(pl.program_id(2) == 0)
    def _():
        acc_ref[...] = jnp.zeros_like(acc_ref)

    acc_ref[...] += jnp.dot(x_ref[...], w_ref[...],
                            preferred_element_type=jnp.float32)

    @pl.when(pl.program_id(2) == pl.num_programs(2) - 1)
    def _():
        y = acc_ref[...] + b_ref[...]
        if act == "relu":
            y = jnp.maximum(y, 0.0)
        elif act == "mish":
            # numerically stable softplus (avoids exp overflow -> NaN)
            y = y * jnp.tanh(jax.nn.softplus(y))
        o_ref[...] = y.astype(o_ref.dtype)


def pallas_linear(x, w, b, act=None, out_dtype=None):
    """x [..., K] @ w [K, N] + b [N]   (bf16 MXU inputs, f32 accumulation)."""
    shape = x.shape
    K = shape[-1]
    M = int(np.prod(shape[:-1]))
    N = w.shape[-1]
    out_dtype = out_dtype or COMPUTE_DTYPE
    x2 = x.reshape(M, K).astype(COMPUTE_DTYPE)

    # Tile sizes chosen to fit v7x's 64 MiB VMEM comfortably (bf16 inputs,
    # f32 accumulator): 2*(tm*tk + tk*tn)*2 + tm*tn*4 << 32 MiB.
    tm = _pick_tile(M, (256, 128))
    tn = _pick_tile(N, (256, 128))
    tk = _pick_tile(K, (512, 256, 128))
    grid = (M // tm, N // tn, K // tk)

    out = pl.pallas_call(
        functools.partial(_linear_kernel, act=act),
        out_shape=jax.ShapeDtypeStruct((M, N), out_dtype),
        grid=grid,
        in_specs=[
            pl.BlockSpec((tm, tk), lambda i, j, k: (i, k)),
            pl.BlockSpec((tk, tn), lambda i, j, k: (k, j)),
            pl.BlockSpec((1, tn), lambda i, j, k: (0, j)),
        ],
        out_specs=pl.BlockSpec((tm, tn), lambda i, j, k: (i, j)),
        scratch_shapes=[pltpu.VMEM((tm, tn), jnp.float32)],
        compiler_params=pltpu.CompilerParams(
            dimension_semantics=("parallel", "parallel", "arbitrary")),
    )(x2, w.astype(COMPUTE_DTYPE), b.reshape(1, -1).astype(jnp.float32))
    return out.reshape(shape[:-1] + (N,))


def _mhsa_ln_kernel(x_ref, wqkv_ref, bqkv_ref, wo_ref, bo_ref,
                    mk_ref, mr_ref, g_ref, be_ref, o_ref, *, n_head, eps):
    """Fused MHSA sub-block for ONE batch element:

      QKV projection -> per-head masked softmax attention -> out-projection
      -> residual add -> LayerNorm -> pad-mask zeroing.

    All intermediates (qkv, scores, per-head context) stay in VMEM; no HBM
    round trips and no host-side head-split transposes.
    """
    x = x_ref[0]                                            # [T, H] bf16
    H = x.shape[-1]
    dh = H // n_head
    scale = 1.0 / math.sqrt(dh)

    qkv = (jnp.dot(x, wqkv_ref[...], preferred_element_type=jnp.float32)
           + bqkv_ref[...]).astype(x.dtype)                 # [T, 3H]

    key_bias = mk_ref[0] * (-1e9)                           # [1, T], 1.0 = pad

    # Per-head work unrolled (n_head is a small static int); static column
    # slices avoid any in-kernel lane-axis reshapes.
    # TODO(synk): for long T, tile the query axis (flash-style) so the T x T
    # score block stays inside v7x's 64 MiB VMEM.
    ctx_heads = []
    for h in range(n_head):
        q_h = qkv[:, h * dh:(h + 1) * dh]
        k_h = qkv[:, H + h * dh:H + (h + 1) * dh]
        v_h = qkv[:, 2 * H + h * dh:2 * H + (h + 1) * dh]
        s = jax.lax.dot_general(q_h, k_h, (((1,), (1,)), ((), ())),
                                preferred_element_type=jnp.float32) * scale
        s = s + key_bias                                    # [T, T]
        s = s - jnp.max(s, axis=-1, keepdims=True)
        p = jnp.exp(s)
        denom = jnp.sum(p, axis=-1, keepdims=True)
        p = p * pl.reciprocal(denom, approx=True)           # EUP slot, ~free
        ctx_heads.append(jnp.dot(p.astype(v_h.dtype), v_h,
                                 preferred_element_type=jnp.float32))
    ctx = jnp.concatenate(ctx_heads, axis=-1).astype(x.dtype)   # [T, H]

    y = jnp.dot(ctx, wo_ref[...],
                preferred_element_type=jnp.float32) + bo_ref[...]
    y = y + x.astype(jnp.float32)                           # residual
    mean = jnp.mean(y, axis=-1, keepdims=True)
    var = jnp.mean((y - mean) ** 2, axis=-1, keepdims=True)
    y = (y - mean) * jax.lax.rsqrt(var + eps) * g_ref[...] + be_ref[...]
    y = jnp.where(mr_ref[0] > 0, 0.0, y)                    # zero padded rows
    o_ref[0] = y.astype(o_ref.dtype)


def pallas_mhsa_ln(x, w_qkv, b_qkv, wo, bo, pad_mask, gamma, beta, n_head,
                   eps=1e-5):
    """x: [B,T,H]; pad_mask: [B,T] bool (True = padded). Returns [B,T,H]."""
    B, T, H = x.shape
    mask_key = pad_mask.astype(jnp.float32).reshape(B, 1, T)
    mask_row = pad_mask.astype(jnp.float32).reshape(B, T, 1)
    return pl.pallas_call(
        functools.partial(_mhsa_ln_kernel, n_head=n_head, eps=eps),
        out_shape=jax.ShapeDtypeStruct((B, T, H), COMPUTE_DTYPE),
        grid=(B,),
        in_specs=[
            pl.BlockSpec((1, T, H), lambda b: (b, 0, 0)),
            pl.BlockSpec((H, 3 * H), lambda b: (0, 0)),
            pl.BlockSpec((1, 3 * H), lambda b: (0, 0)),
            pl.BlockSpec((H, H), lambda b: (0, 0)),
            pl.BlockSpec((1, H), lambda b: (0, 0)),
            pl.BlockSpec((1, 1, T), lambda b: (b, 0, 0)),
            pl.BlockSpec((1, T, 1), lambda b: (b, 0, 0)),
            pl.BlockSpec((1, H), lambda b: (0, 0)),
            pl.BlockSpec((1, H), lambda b: (0, 0)),
        ],
        out_specs=pl.BlockSpec((1, T, H), lambda b: (b, 0, 0)),
        compiler_params=pltpu.CompilerParams(dimension_semantics=("parallel",)),
    )(x.astype(COMPUTE_DTYPE), w_qkv.astype(COMPUTE_DTYPE),
      b_qkv.reshape(1, -1).astype(jnp.float32),
      wo.astype(COMPUTE_DTYPE), bo.reshape(1, -1).astype(jnp.float32),
      mask_key, mask_row,
      gamma.reshape(1, -1).astype(jnp.float32),
      beta.reshape(1, -1).astype(jnp.float32))


def _conv_taps_matmul(x, w_flat, K, dilation):
    """In-VMEM same-padded Conv1d as ONE GEMM: [T, K*C] @ [K*C, Cout] -> f32.

    x: [T, C]; w_flat: [K*C, Cout] (rows ordered k*C + c). Padding is built
    inside the kernel (no HBM copy of a padded array).
    """
    if K == 1:
        return jnp.dot(x, w_flat, preferred_element_type=jnp.float32)
    T, C = x.shape
    pad = (K - 1) // 2 * dilation
    zpad = jnp.zeros((pad, C), dtype=x.dtype)
    xp = jnp.concatenate([zpad, x, zpad], axis=0)          # [T + 2*pad, C]
    taps = [xp[kk * dilation:kk * dilation + T, :] for kk in range(K)]
    xt = jnp.concatenate(taps, axis=-1)                    # [T, K*C]
    return jnp.dot(xt, w_flat, preferred_element_type=jnp.float32)


def _ffn_ln_kernel(x_ref, w1_ref, b1_ref, w2_ref, b2_ref, m_ref, g_ref, be_ref,
                   o_ref, *, k1, k2, eps):
    """Fused FFT-block feed-forward: conv1(relu) + conv2 + residual + LN + mask."""
    x = x_ref[0]                                           # [T, H] bf16
    h = _conv_taps_matmul(x, w1_ref[...], k1, 1) + b1_ref[...]
    h = jnp.maximum(h, 0.0)
    h2 = _conv_taps_matmul(h.astype(x.dtype), w2_ref[...], k2, 1) + b2_ref[...]
    y = h2 + x.astype(jnp.float32)                         # residual
    mean = jnp.mean(y, axis=-1, keepdims=True)
    var = jnp.mean((y - mean) ** 2, axis=-1, keepdims=True)
    y = (y - mean) * jax.lax.rsqrt(var + eps) * g_ref[...] + be_ref[...]
    y = jnp.where(m_ref[0] > 0, 0.0, y)
    o_ref[0] = y.astype(o_ref.dtype)


def pallas_ffn_ln(x, w1f, b1, w2f, b2, pad_mask, gamma, beta, k1, k2, eps=1e-5):
    """x: [B,T,H]; w1f: [k1*H, F]; w2f: [k2*F, H]; same-padded convs over time."""
    B, T, H = x.shape
    F = w1f.shape[-1]
    mask = pad_mask.reshape(B, T, 1).astype(jnp.float32)
    # TODO(synk): for long T, tile the time axis with halo blocks instead of
    # one whole-sequence block per batch.
    return pl.pallas_call(
        functools.partial(_ffn_ln_kernel, k1=k1, k2=k2, eps=eps),
        out_shape=jax.ShapeDtypeStruct((B, T, H), COMPUTE_DTYPE),
        grid=(B,),
        in_specs=[
            pl.BlockSpec((1, T, H), lambda b: (b, 0, 0)),
            pl.BlockSpec((k1 * H, F), lambda b: (0, 0)),
            pl.BlockSpec((1, F), lambda b: (0, 0)),
            pl.BlockSpec((k2 * F, H), lambda b: (0, 0)),
            pl.BlockSpec((1, H), lambda b: (0, 0)),
            pl.BlockSpec((1, T, 1), lambda b: (b, 0, 0)),
            pl.BlockSpec((1, H), lambda b: (0, 0)),
            pl.BlockSpec((1, H), lambda b: (0, 0)),
        ],
        out_specs=pl.BlockSpec((1, T, H), lambda b: (b, 0, 0)),
        compiler_params=pltpu.CompilerParams(dimension_semantics=("parallel",)),
    )(x.astype(COMPUTE_DTYPE), w1f.astype(COMPUTE_DTYPE),
      b1.reshape(1, -1).astype(jnp.float32), w2f.astype(COMPUTE_DTYPE),
      b2.reshape(1, -1).astype(jnp.float32), mask,
      gamma.reshape(1, -1).astype(jnp.float32),
      beta.reshape(1, -1).astype(jnp.float32))


def _diffnet_stack_kernel(x_ref, cond_ref, diff_ref, cpw_ref, cpb_ref,
                          dcw_ref, dcb_ref, opw_ref, opb_ref,
                          skip_ref, x_state, skip_acc,
                          *, ksz, rc, inv_sqrt2, inv_sqrt_l):
    """One grid step = one DiffNet residual layer of one batch element.

    x_state / skip_acc live in VMEM scratch across the layer ("arbitrary")
    grid axis, so the entire WaveNet stack never touches HBM in between.
    """
    l = pl.program_id(1)

    @pl.when(l == 0)
    def _():
        x_state[...] = x_ref[0].astype(jnp.float32)
        skip_acc[...] = jnp.zeros_like(skip_acc)

    x = x_state[...]                                       # [T, rc] f32
    diff = diff_ref[0, 0]                                  # [1, rc] f32
    cond = cond_ref[0]                                     # [T, H] bf16

    conv_in = (x + diff).astype(cond.dtype)                # [T, rc] bf16
    c = jnp.dot(cond, cpw_ref[0],
                preferred_element_type=jnp.float32) + cpb_ref[0]
    h = _conv_taps_matmul(conv_in, dcw_ref[0], ksz, 1) + dcb_ref[0] + c
    gate = h[:, :rc]
    filt = h[:, rc:]
    sig = 1.0 / (1.0 + jnp.exp(-gate))
    g = (sig * jnp.tanh(filt)).astype(cond.dtype)
    y2 = jnp.dot(g, opw_ref[0],
                 preferred_element_type=jnp.float32) + opb_ref[0]
    res = y2[:, :rc]
    skip = y2[:, rc:]
    x_state[...] = (x + res) * inv_sqrt2
    skip_acc[...] = skip_acc[...] + skip

    @pl.when(l == pl.num_programs(1) - 1)
    def _():
        skip_ref[0] = (skip_acc[...] * inv_sqrt_l).astype(skip_ref.dtype)


def pallas_diffnet_stack(x, cond, diff_all, cpw, cpb, dcw, dcb, opw, opb, ksz):
    """Fused DiffNet residual stack.

    x: [B,T,rc]; cond: [B,T,H]; diff_all: [L,B,1,rc] (step emb per layer);
    stacked weights: cpw [L,H,2rc], dcw [L,ksz*rc,2rc], opw [L,rc,2rc],
    biases [L,1,2rc].  Returns the normalised skip sum [B,T,rc].
    """
    B, T, rc = x.shape
    H = cond.shape[-1]
    L = diff_all.shape[0]
    kern = functools.partial(
        _diffnet_stack_kernel, ksz=ksz, rc=rc,
        inv_sqrt2=1.0 / math.sqrt(2.0), inv_sqrt_l=1.0 / math.sqrt(L))
    return pl.pallas_call(
        kern,
        out_shape=jax.ShapeDtypeStruct((B, T, rc), COMPUTE_DTYPE),
        grid=(B, L),
        in_specs=[
            pl.BlockSpec((1, T, rc), lambda b, l: (b, 0, 0)),           # x
            pl.BlockSpec((1, T, H), lambda b, l: (b, 0, 0)),            # cond
            pl.BlockSpec((1, 1, 1, rc), lambda b, l: (l, b, 0, 0)),     # diff
            pl.BlockSpec((1, H, 2 * rc), lambda b, l: (l, 0, 0)),       # cp_w
            pl.BlockSpec((1, 1, 2 * rc), lambda b, l: (l, 0, 0)),       # cp_b
            pl.BlockSpec((1, ksz * rc, 2 * rc), lambda b, l: (l, 0, 0)),  # dc_w
            pl.BlockSpec((1, 1, 2 * rc), lambda b, l: (l, 0, 0)),       # dc_b
            pl.BlockSpec((1, rc, 2 * rc), lambda b, l: (l, 0, 0)),      # op_w
            pl.BlockSpec((1, 1, 2 * rc), lambda b, l: (l, 0, 0)),       # op_b
        ],
        out_specs=pl.BlockSpec((1, T, rc), lambda b, l: (b, 0, 0)),
        scratch_shapes=[pltpu.VMEM((T, rc), jnp.float32),   # x state
                        pltpu.VMEM((T, rc), jnp.float32)],  # skip accumulator
        compiler_params=pltpu.CompilerParams(
            dimension_semantics=("parallel", "arbitrary")),
    )(x.astype(COMPUTE_DTYPE), cond.astype(COMPUTE_DTYPE),
      diff_all.astype(jnp.float32),
      cpw.astype(COMPUTE_DTYPE), cpb.astype(jnp.float32),
      dcw.astype(COMPUTE_DTYPE), dcb.astype(jnp.float32),
      opw.astype(COMPUTE_DTYPE), opb.astype(jnp.float32))


# ---------------------------------------------------------------------------
# Plain-JAX glue (masks, embeddings, pitch tools, positional tables)
# ---------------------------------------------------------------------------

def get_mask_from_lengths(lengths, max_len):
    ids = jnp.arange(max_len)[None, :]
    return ids >= lengths[:, None]          # True = padded


F0_BIN, F0_MIN, F0_MAX = 256, 50.0, 1100.0
F0_MEL_MIN = 1127.0 * math.log(1.0 + F0_MIN / 700.0)
F0_MEL_MAX = 1127.0 * math.log(1.0 + F0_MAX / 700.0)


def f0_to_coarse(f0):
    f0_mel = 1127.0 * jnp.log(1.0 + f0 / 700.0)
    f0_mel = jnp.where(
        f0_mel > 0.0,
        (f0_mel - F0_MEL_MIN) * (F0_BIN - 2) / (F0_MEL_MAX - F0_MEL_MIN) + 1.0,
        f0_mel)
    f0_mel = jnp.where(f0_mel <= 1.0, 1.0, f0_mel)
    f0_mel = jnp.where(f0_mel > F0_BIN - 1, float(F0_BIN - 1), f0_mel)
    return jnp.rint(f0_mel).astype(jnp.int32)


def get_sinusoid_table(n_position, d_hid):
    pos = np.arange(n_position)[:, None].astype(np.float64)
    div = np.power(10000.0, 2.0 * (np.arange(d_hid) // 2) / d_hid)[None, :]
    table = pos / div
    table[:, 0::2] = np.sin(table[:, 0::2])
    table[:, 1::2] = np.cos(table[:, 1::2])
    return jnp.asarray(table, dtype=jnp.float32)


# ---------------------------------------------------------------------------
# Model pieces (built on Pallas kernels)
# ---------------------------------------------------------------------------

def fft_block(p, x, pad_mask, n_head, k1, k2):
    # --- fused multi-head self attention sub-block (post-LN, FS2 style) ---
    out = pallas_mhsa_ln(x, p["w_qkv"], p["b_qkv"], p["wo"], p["bo"],
                         pad_mask, p["ln1_g"], p["ln1_b"], n_head)
    # --- fused position-wise conv feed-forward sub-block ---
    out = pallas_ffn_ln(out, p["conv1_wf"], p["conv1_b"],
                        p["conv2_wf"], p["conv2_b"],
                        pad_mask, p["ln2_g"], p["ln2_b"], k1, k2)
    return out


def fastspeech_encoder(p, contents, src_mask, spk_emb, cfg):
    # TODO(synk): FastspeechEncoder source not provided; reconstructed as a
    # linear content projection + sinusoidal PE + speaker add + FFT blocks.
    tr = cfg["transformer"]
    T = contents.shape[1]
    x = pallas_linear(contents, p["in_w"], p["in_b"], out_dtype=jnp.float32)
    x = x + p["pos_table"][None, :T, :] + spk_emb
    x = x.astype(COMPUTE_DTYPE)
    for blk in p["layers"]:
        x = fft_block(blk, x, src_mask, tr["encoder_head"],
                      tr["conv_kernel_size"][0], tr["conv_kernel_size"][1])
    return x


def fastspeech_decoder(p, x, mel_mask, cfg):
    tr = cfg["transformer"]
    T = x.shape[1]
    x = (x + p["pos_table"][None, :T, :]).astype(COMPUTE_DTYPE)
    for blk in p["layers"]:
        x = fft_block(blk, x, mel_mask, tr["decoder_head"],
                      tr["conv_kernel_size"][0], tr["conv_kernel_size"][1])
    return x


def diffnet_denoiser(p, x_t, t, cond, cfg):
    """WaveNet-style denoiser.  x_t [B,T,M], cond [B,T,H], t [B] -> eps [B,T,M]."""
    rc = cfg["denoiser"]["residual_channels"]
    ksz = cfg["denoiser"]["kernel_size"]

    x = pallas_linear(x_t, p["in_w"], p["in_b"], act="relu")        # [B,T,rc]

    # --- tiny diffusion-step MLP in plain JAX (launch overhead >> FLOPs) ---
    half = rc // 2
    freqs = jnp.exp(jnp.arange(half, dtype=jnp.float32) *
                    (-math.log(10000.0) / (half - 1)))
    e = t.astype(jnp.float32)[:, None] * freqs[None, :]
    demb = jnp.concatenate([jnp.sin(e), jnp.cos(e)], axis=-1)       # [B, rc]
    h = demb @ p["mlp1_w"] + p["mlp1_b"]
    h = h * jnp.tanh(jax.nn.softplus(h))                            # stable mish
    demb = h @ p["mlp2_w"] + p["mlp2_b"]                            # [B, rc]
    # per-layer step projections, also tiny: [L,B,rc]
    diff_all = jnp.einsum("br,lrs->lbs", demb, p["dp_w_all"]) \
        + p["dp_b_all"][:, None, :]
    diff_all = diff_all[:, :, None, :]                              # [L,B,1,rc]

    # --- fused residual stack (single pallas_call) ---
    skip = pallas_diffnet_stack(x, cond, diff_all,
                                p["cp_w_all"], p["cp_b_all"],
                                p["dc_w_all"], p["dc_b_all"],
                                p["op_w_all"], p["op_b_all"], ksz)

    x = pallas_linear(skip, p["skip_w"], p["skip_b"], act="relu")
    x = pallas_linear(x, p["out_w"], p["out_b"], out_dtype=jnp.float32)
    return x                                                        # [B,T,M]


def norm_spec(x, cfg):
    lo, hi = cfg["diffusion"]["spec_min"], cfg["diffusion"]["spec_max"]
    return (x - lo) / (hi - lo) * 2.0 - 1.0


def denorm_spec(x, cfg):
    lo, hi = cfg["diffusion"]["spec_min"], cfg["diffusion"]["spec_max"]
    return (x + 1.0) / 2.0 * (hi - lo) + lo


def gaussian_diffusion_shallow(p, mels, cond, mel_mask, cfg, rng):
    B, T, M = mels.shape
    dcfg = cfg["diffusion"]
    betas = jnp.linspace(dcfg["beta_start"], dcfg["beta_end"],
                         dcfg["timesteps"], dtype=jnp.float32)
    alphas_cumprod = jnp.cumprod(1.0 - betas)
    rng_t, rng_n = jax.random.split(rng)
    t = jax.random.randint(rng_t, (B,), 0, dcfg["K_step"])
    x_start = norm_spec(mels, cfg)
    noise = jax.random.normal(rng_n, x_start.shape, dtype=jnp.float32)
    sqrt_ac = jnp.sqrt(alphas_cumprod)[t][:, None, None]
    sqrt_omac = jnp.sqrt(1.0 - alphas_cumprod)[t][:, None, None]
    x_t = sqrt_ac * x_start + sqrt_omac * noise                 # q_sample
    eps_pred = diffnet_denoiser(p["denoiser"], x_t, t, cond, cfg)
    keep = (~mel_mask)[..., None].astype(jnp.float32)
    noise_loss = jnp.sum(jnp.abs(eps_pred - noise) * keep) / (jnp.sum(keep) * M)
    # TODO(synk): the original GaussianDiffusionShallow returns None for the
    # sampled mel during training; here we return the denormalized x0
    # reconstruction instead of faking a sampler loop.
    x0 = (x_t - sqrt_omac * eps_pred) / sqrt_ac
    output = denorm_spec(x0, cfg)
    return output, eps_pred, noise_loss, t


def diffsinger_forward(params, cfg, speakers, contents, src_lens, max_src_len,
                       mels, mel_lens, max_mel_len, pitches, rng):
    src_masks = get_mask_from_lengths(src_lens, max_src_len)
    mel_masks = get_mask_from_lengths(mel_lens, max_mel_len)

    spk = jnp.take(params["speaker_emb"], speakers, axis=0)      # [B, H]
    spk_emb = jnp.broadcast_to(spk[:, None, :],
                               (speakers.shape[0], max_src_len, spk.shape[-1]))

    output = fastspeech_encoder(params["encoder"], contents, src_masks,
                                spk_emb, cfg)
    output = output.astype(jnp.float32) + jnp.take(
        params["pitch_emb"], f0_to_coarse(pitches), axis=0)

    cond = output                                                # output.clone()
    output = fastspeech_decoder(params["decoder"], output, mel_masks, cfg)
    output = pallas_linear(output, params["mel_linear"]["w"],
                           params["mel_linear"]["b"], out_dtype=jnp.float32)
    aux_mel = output                                             # self.diffusion.aux_mel

    out_mel, eps_pred, noise_loss, diffusion_step = gaussian_diffusion_shallow(
        params["diffusion"], mels, cond, mel_masks, cfg, rng)

    return (out_mel, eps_pred, noise_loss, diffusion_step,
            src_masks, mel_masks, src_lens, mel_lens, aux_mel)


# ---------------------------------------------------------------------------
# Parameter initialization (deterministic, synthetic)
# ---------------------------------------------------------------------------

class KeyGen:
    def __init__(self, key):
        self.key = key

    def __call__(self):
        self.key, sub = jax.random.split(self.key)
        return sub


def init_params(cfg, key):
    kg = KeyGen(key)
    tr = cfg["transformer"]
    H, Hd = tr["encoder_hidden"], tr["decoder_hidden"]
    filt = tr["conv_filter_size"]
    k1, k2 = tr["conv_kernel_size"]
    M = cfg["preprocessing"]["mel"]["n_mel_channels"]
    rc = cfg["denoiser"]["residual_channels"]
    ksz = cfg["denoiser"]["kernel_size"]
    L = cfg["denoiser"]["residual_layers"]
    Cc = cfg["content_dim"]
    WDT = COMPUTE_DTYPE

    def nrm(shape, scale=0.02):
        return scale * jax.random.normal(kg(), shape, dtype=jnp.float32)

    def zeros(n):
        return jnp.zeros((n,), jnp.float32)

    def ones(n):
        return jnp.ones((n,), jnp.float32)

    def fft_block_params(h):
        wq, wk, wv = nrm((h, h)), nrm((h, h)), nrm((h, h))
        return dict(
            w_qkv=jnp.concatenate([wq, wk, wv], axis=1).astype(WDT),
            b_qkv=zeros(3 * h),
            wo=nrm((h, h)).astype(WDT), bo=zeros(h),
            ln1_g=ones(h), ln1_b=zeros(h),
            conv1_wf=nrm((k1, h, filt)).reshape(k1 * h, filt).astype(WDT),
            conv1_b=zeros(filt),
            conv2_wf=nrm((k2, filt, h)).reshape(k2 * filt, h).astype(WDT),
            conv2_b=zeros(h),
            ln2_g=ones(h), ln2_b=zeros(h),
        )

    params = dict(
        speaker_emb=nrm((cfg["n_speakers"], H)),
        pitch_emb=nrm((256, H)),
        encoder=dict(
            in_w=nrm((Cc, H)).astype(WDT), in_b=zeros(H),
            pos_table=get_sinusoid_table(cfg["max_seq_len"], H),
            layers=[fft_block_params(H) for _ in range(tr["encoder_layer"])],
        ),
        decoder=dict(
            pos_table=get_sinusoid_table(cfg["max_seq_len"], Hd),
            layers=[fft_block_params(Hd) for _ in range(tr["decoder_layer"])],
        ),
        mel_linear=dict(w=nrm((Hd, M)).astype(WDT), b=zeros(M)),
        diffusion=dict(denoiser=dict(
            in_w=nrm((M, rc)).astype(WDT), in_b=zeros(rc),
            mlp1_w=nrm((rc, 4 * rc)), mlp1_b=zeros(4 * rc),
            mlp2_w=nrm((4 * rc, rc)), mlp2_b=zeros(rc),
            dp_w_all=nrm((L, rc, rc)),
            dp_b_all=jnp.zeros((L, rc), jnp.float32),
            cp_w_all=nrm((L, H, 2 * rc)).astype(WDT),
            cp_b_all=jnp.zeros((L, 1, 2 * rc), jnp.float32),
            dc_w_all=nrm((L, ksz, rc, 2 * rc)).reshape(L, ksz * rc, 2 * rc).astype(WDT),
            dc_b_all=jnp.zeros((L, 1, 2 * rc), jnp.float32),
            op_w_all=nrm((L, rc, 2 * rc)).astype(WDT),
            op_b_all=jnp.zeros((L, 1, 2 * rc), jnp.float32),
            skip_w=nrm((rc, rc)).astype(WDT), skip_b=zeros(rc),
            out_w=jnp.zeros((rc, M), WDT),   # zero-init, as in DiffNet
            out_b=zeros(M),
        )),
    )
    return params


# ---------------------------------------------------------------------------
# Main
# ---------------------------------------------------------------------------

if __name__ == "__main__":
    CFG = dict(
        transformer=dict(
            encoder_hidden=32, decoder_hidden=32,
            encoder_layer=1, decoder_layer=1,
            encoder_head=2, decoder_head=2,
            conv_filter_size=64, conv_kernel_size=[9, 1],
        ),
        preprocessing=dict(mel=dict(n_mel_channels=16)),
        multi_speaker=True, n_speakers=4,
        denoiser=dict(residual_channels=32, residual_layers=2, kernel_size=3),
        diffusion=dict(K_step=10, timesteps=20, beta_start=1e-4, beta_end=0.06,
                       spec_min=-6.0, spec_max=1.5),
        content_dim=16,
        max_seq_len=64,
    )

    key = jax.random.PRNGKey(0)
    k_param, k_c, k_m, k_p, k_diff = jax.random.split(key, 5)
    params = init_params(CFG, k_param)

    B, T = 2, 8
    M = CFG["preprocessing"]["mel"]["n_mel_channels"]
    speakers = jnp.array([0, 1], dtype=jnp.int32)
    contents = jax.random.normal(k_c, (B, T, CFG["content_dim"]), dtype=jnp.float32)
    src_lens = jnp.array([8, 6], dtype=jnp.int32)
    mel_lens = jnp.array([8, 6], dtype=jnp.int32)
    mels = jax.random.normal(k_m, (B, T, M), dtype=jnp.float32) * 1.5 - 3.0
    pitches = 150.0 + 100.0 * jax.random.uniform(k_p, (B, T), dtype=jnp.float32)
    pitches = jnp.where(get_mask_from_lengths(src_lens, T), 0.0, pitches)

    outputs = diffsinger_forward(
        params, CFG, speakers, contents, src_lens, T,
        mels, mel_lens, T, pitches, k_diff)

    outputs = jax.block_until_ready(outputs)
    out_mel, eps_pred, noise_loss, diff_step = outputs[0], outputs[1], outputs[2], outputs[3]
    assert out_mel.shape == (B, T, M)
    assert eps_pred.shape == (B, T, M)
    assert noise_loss.shape == ()
    assert diff_step.shape == (B,)
    assert bool(jnp.all(jnp.isfinite(out_mel)))
    assert bool(jnp.isfinite(noise_loss))
    print("KERNEL_OK")
</pallas_src>

<mosaic_0001>
module attributes {stable_mosaic.version = 11 : i64} {
  func.func @_linear_kernel(%arg0: i32, %arg1: i32, %arg2: i32, %arg3: memref<16x16xbf16, #tpu.memory_space<vmem>>, %arg4: memref<16x32xbf16, #tpu.memory_space<vmem>>, %arg5: memref<1x32xf32, #tpu.memory_space<vmem>>, %arg6: memref<16x32xf32, #tpu.memory_space<vmem>>, %arg7: memref<16x32xf32, #tpu.memory_space<vmem>>) attributes {dimension_semantics = [#tpu.dimension_semantics<parallel>, #tpu.dimension_semantics<parallel>, #tpu.dimension_semantics<arbitrary>], iteration_bounds = array<i64: 1, 1, 1>, scalar_prefetch = 0 : i64, scratch_operands = 1 : i64, tpu.core_type = #tpu.core_type<tc>, window_params = [{transform_indices = @transform_0, window_bounds = array<i64: 16, 16>}, {transform_indices = @transform_1, window_bounds = array<i64: 16, 32>}, {transform_indices = @transform_2, window_bounds = array<i64: 1, 32>}, {transform_indices = @transform_3, window_bounds = array<i64: 16, 32>}]} {
    %c0_i32 = arith.constant 0 : i32
    %0 = arith.cmpi eq, %arg2, %c0_i32 : i32
    %1 = arith.extui %0 : i1 to i32
    %c0_i32_0 = arith.constant 0 : i32
    %2 = arith.cmpi ne, %1, %c0_i32_0 : i32
    scf.if %2 {
      %cst_10 = arith.constant 0.000000e+00 : f32
      %12 = vector.broadcast %cst_10 : f32 to vector<16x32xf32>
      %c0_11 = arith.constant 0 : index
      %c0_12 = arith.constant 0 : index
      %13 = vector.load %arg7[%c0_11, %c0_12] : memref<16x32xf32, #tpu.memory_space<vmem>>, vector<16x32xf32>
      tpu.vector_store %arg7[%c0_11, %c0_12], %12 {strides = array<i32>} : memref<16x32xf32, #tpu.memory_space<vmem>>, vector<16x32xf32>,
    } else {
    }
    %c0 = arith.constant 0 : index
    %c0_1 = arith.constant 0 : index
    %3 = vector.load %arg7[%c0, %c0_1] : memref<16x32xf32, #tpu.memory_space<vmem>>, vector<16x32xf32>
    %c0_2 = arith.constant 0 : index
    %c0_3 = arith.constant 0 : index
    %4 = vector.load %arg3[%c0_2, %c0_3] : memref<16x16xbf16, #tpu.memory_space<vmem>>, vector<16x16xbf16>
    %c0_4 = arith.constant 0 : index
    %c0_5 = arith.constant 0 : index
    %5 = vector.load %arg4[%c0_4, %c0_5] : memref<16x32xbf16, #tpu.memory_space<vmem>>, vector<16x32xbf16>
    %cst = arith.constant dense<0.000000e+00> : vector<16x32xf32>
    %6 = tpu.matmul %4, %5, %cst {dimension_numbers = #tpu.dot_dimension_numbers<[1], [0], [0], [1], [0, 0, 1, 1], [], []>} : vector<16x16xbf16>, vector<16x32xbf16>, vector<16x32xf32> -> vector<16x32xf32>
    %7 = arith.addf %3, %6 : vector<16x32xf32>
    %c0_6 = arith.constant 0 : index
    %c0_7 = arith.constant 0 : index
    %8 = vector.load %arg7[%c0_6, %c0_7] : memref<16x32xf32, #tpu.memory_space<vmem>>, vector<16x32xf32>
    tpu.vector_store %arg7[%c0_6, %c0_7], %7 {strides = array<i32>} : memref<16x32xf32, #tpu.memory_space<vmem>>, vector<16x32xf32>,
    %c0_i32_8 = arith.constant 0 : i32
    %9 = arith.cmpi eq, %arg2, %c0_i32_8 : i32
    %10 = arith.extui %9 : i1 to i32
    %c0_i32_9 = arith.constant 0 : i32
    %11 = arith.cmpi ne, %10, %c0_i32_9 : i32
    scf.if %11 {
      %c0_10 = arith.constant 0 : index
      %c0_11 = arith.constant 0 : index
      %12 = vector.load %arg7[%c0_10, %c0_11] : memref<16x32xf32, #tpu.memory_space<vmem>>, vector<16x32xf32>
      %c0_12 = arith.constant 0 : index
      %c0_13 = arith.constant 0 : index
      %13 = vector.load %arg5[%c0_12, %c0_13] : memref<1x32xf32, #tpu.memory_space<vmem>>, vector<1x32xf32>
      %14 = vector.broadcast %13 : vector<1x32xf32> to vector<16x32xf32>
      %15 = arith.addf %12, %14 : vector<16x32xf32>
      %c0_14 = arith.constant 0 : index
      %c0_15 = arith.constant 0 : index
      %16 = vector.load %arg6[%c0_14, %c0_15] : memref<16x32xf32, #tpu.memory_space<vmem>>, vector<16x32xf32>
      tpu.vector_store %arg6[%c0_14, %c0_15], %15 {strides = array<i32>} : memref<16x32xf32, #tpu.memory_space<vmem>>, vector<16x32xf32>,
    } else {
    }
    return
  }
  func.func @transform_0(%arg0: i32, %arg1: i32, %arg2: i32) -> (i32, i32) {
    %c0_i32 = arith.constant 0 : i32
    return %arg0, %arg2 : i32, i32
  }
  func.func @transform_1(%arg0: i32, %arg1: i32, %arg2: i32) -> (i32, i32) {
    %c0_i32 = arith.constant 0 : i32
    return %arg2, %arg1 : i32, i32
  }
  func.func @transform_2(%arg0: i32, %arg1: i32, %arg2: i32) -> (i32, i32) {
    %c0_i32 = arith.constant 0 : i32
    %c0_i32_0 = arith.constant 0 : i32
    return %c0_i32, %arg1 : i32, i32
  }
  func.func @transform_3(%arg0: i32, %arg1: i32, %arg2: i32) -> (i32, i32) {
    %c0_i32 = arith.constant 0 : i32
    return %arg0, %arg1 : i32, i32
  }
}

</mosaic_0001>

<llo_original>
// kernel: tpu_custom_call.1
$region0: #{tpu_custom_call.1}
  #allocation0 [shape = 'u32[]', space=smem, size = 0x4, offset = 0x4, fixed_abs, tag = 'smem constant byte address 0x4 - core index']
  #allocation1 [shape = 'u32[144,128]{1,0:T(1,128)}', space=vmem, size = 0x12000, scoped, tag = 'internal scratch']
  #allocation2 [shape = 'f32[16,32]{1,0:T(8,128)}', space=vmem, size = 0x2000, scoped, tag = 'scratch operand']
  %s0 = inlined_call_operand.hbm [shape: bf16[16,16], index: 0, kind: input, shape index: {}]
  %s1 = inlined_call_operand.hbm [shape: bf16[16,32], index: 1, kind: input, shape index: {}]
  %s2 = inlined_call_operand.vmem [shape: f32[1,32], index: 2, kind: input, shape index: {}]
  %s3 = inlined_call_operand.hbm [shape: f32[16,32], index: 3, kind: output, shape index: {}]
  %s4 = sld [smem:[#allocation0]]
  $region38: #{tpu_custom_call.1} parent=0
    _
  %s6 = ssub.s32 1, %s4
  %s7 = scalar_select 0, %s6, %s4
  $region1: #{tpu_custom_call.1} parent=0
    #allocation3 [shape = 'u8[4096]{0}', space=vmem, size = 0x1000, scoped, tag = 'input window, operand 0, single buffered']
    #allocation4 [shape = 's32[1]{0}', space=sflag, size = 0x4, scoped, tag = 'scoped memory for tpu_custom_call.1']
    #allocation5 [shape = 's32[1]{0}', space=sflag, size = 0x4, scoped, tag = 'scoped memory for tpu_custom_call.1']
    #allocation6 [shape = 'u8[4096]{0}', space=vmem, size = 0x1000, scoped, tag = 'input window, operand 1, single buffered']
    #allocation7 [shape = 's32[1]{0}', space=sflag, size = 0x4, scoped, tag = 'scoped memory for tpu_custom_call.1']
    #allocation8 [shape = 'u8[8192]{0}', space=vmem, size = 0x2000, scoped, tag = 'output window, operand 0, single buffered']
    %8 = vsyncpa [#allocation4], 0
    %9 = vsyncpa [#allocation7], 0
    %10 = vsyncpa [#allocation5], 0
    // Predicated region
    $region2: #{tpu_custom_call.1} parent=1 // pred_check
      _
    $region3: #{tpu_custom_call.1} parent=1 // pred_check_branch
      %12 = sbr.rel (0) target = $region5
    $region4: #{tpu_custom_call.1} parent=1 // pred_region
      %s14 = ssub.s32 128, 128
      %15 = vsyncadd [#allocation4], %s14
      %s16 = sshll.u32 [#allocation3], 4
      %s17 = int_to_ptr.vmem [resolvable:$true] %s16
      %22 = dma.hbm_to_vmem [thread:$0]  %s0, 128, %s17, [#allocation4], 64, 64, 4
    $region5: #{tpu_custom_call.1} parent=1 // pred_fallthru
      _
    // Predicated region
    $region6: #{tpu_custom_call.1} parent=1 // pred_check
      _
    $region7: #{tpu_custom_call.1} parent=1 // pred_check_branch
      %24 = sbr.rel (0) target = $region9
    $region8: #{tpu_custom_call.1} parent=1 // pred_region
      %s26 = ssub.s32 128, 128
      %27 = vsyncadd [#allocation7], %s26
      %s28 = sshll.u32 [#allocation6], 4
      %s29 = int_to_ptr.vmem [resolvable:$true] %s28
      %34 = dma.hbm_to_vmem [thread:$0]  %s1, 128, %s29, [#allocation7], 64, 64, 4
    $region9: #{tpu_custom_call.1} parent=1 // pred_fallthru
      _
    // Predicated region
    $region10: #{tpu_custom_call.1} parent=1 // pred_check
      _
    $region11: #{tpu_custom_call.1} parent=1 // pred_check_branch
      %36 = sbr.rel (0) target = $region13
    $region12: #{tpu_custom_call.1} parent=1 // pred_region
      _
    $region13: #{tpu_custom_call.1} parent=1 // pred_fallthru
      _
    // Predicated region
    $region14: #{tpu_custom_call.1} parent=1 // pred_check
      _
    $region15: #{tpu_custom_call.1} parent=1 // pred_check_branch
      %38 = sbr.rel (0) target = $region17
    $region16: #{tpu_custom_call.1} parent=1 // pred_region
      %39 = dma.done [#allocation4], 128
    $region17: #{tpu_custom_call.1} parent=1 // pred_fallthru
      _
    // Predicated region
    $region18: #{tpu_custom_call.1} parent=1 // pred_check
      _
    $region19: #{tpu_custom_call.1} parent=1 // pred_check_branch
      %41 = sbr.rel (0) target = $region21
    $region20: #{tpu_custom_call.1} parent=1 // pred_region
      %42 = dma.done [#allocation7], 128
    $region21: #{tpu_custom_call.1} parent=1 // pred_fallthru
      _
    %p44 = scmp.eq.s32.totalorder 0, 0
    // Predicated region
    $region22: #{tpu_custom_call.1} parent=1 // pred_check
      %p45 = pneg %p44
    $region23: #{tpu_custom_call.1} parent=1 // pred_check_branch
      %47 = sbr.rel (%p45) target = $region25
    $region24: #{tpu_custom_call.1} parent=1 // pred_region
      %vm48 = vcmask 261120
      %49 = vst.msk [vmem:[#allocation2] sm:$0xff] %vm48, 0.0
      %50 = vst.msk [vmem:[#allocation2 + $0x8] sm:$0xff] %vm48, 0.0
    $region25: #{tpu_custom_call.1} parent=1 // pred_fallthru
      _
    %v51 = vld [vmem:[#allocation2] sm:$0xff]
    %v52 = vld [vmem:[#allocation2 + $0x8] sm:$0xff]
    %v53 = vld [vmem:[#allocation3] sm:$0xf]
    %v54 = vld [vmem:[#allocation3 + $0x4] sm:$0xf]
    %v55 = vld [vmem:[#allocation6] sm:$0xf]
    %v56 = vld [vmem:[#allocation6 + $0x4] sm:$0xf]
    %v59 = vunpack.c.l.b16 %v53
    %v60 = vunpack.c.l.b16 %v54
    %v61 = vpack.c.b16 %v60, %v59
    %v64 = vunpack.c.l.b16 %v55
    %v65 = vunpack.c.l.b16 %v56
    %v66 = vpack.c.b16 %v65, %v64
    %vm68 = vcmask 130048
    %v70 = vsel %vm68, %v61, 0
    %72 = vmatprep.subr.bf16.mxu0 0
    %73 = vmatpush1.bf16.msra.mxu0 %v66
    %74 = vmatprep.subr.bf16.mxu0 0
    %75 = vmatpush1.bf16.msra.mxu0 0
    %76 = vmatprep.subr.bf16.mxu0 0
    %77 = vmatpush1.bf16.msra.mxu0 0
    %78 = vmatprep.subr.bf16.mxu0 0
    %79 = vmatpush1.bf16.msra.mxu0 0
    %80 = vmatprep.subr.bf16.mxu0 0
    %81 = vmatpush1.bf16.msra.mxu0 0
    %82 = vmatprep.subr.bf16.mxu0 0
    %83 = vmatpush1.bf16.msra.mxu0 0
    %84 = vmatprep.subr.bf16.mxu0 0
    %85 = vmatpush1.bf16.msra.mxu0 0
    %86 = vmatprep.subr.bf16.mxu0 0
    %87 = vmatpush1.bf16.msra.mxu0 0
    %88 = vmatprep.subr.bf16.mxu0 0
    %89 = vmatpush1.bf16.msra.mxu0 0
    %90 = vmatprep.subr.bf16.mxu0 0
    %91 = vmatpush1.bf16.msra.mxu0 0
    %92 = vmatprep.subr.bf16.mxu0 0
    %93 = vmatpush1.bf16.msra.mxu0 0
    %94 = vmatprep.subr.bf16.mxu0 0
    %95 = vmatpush1.bf16.msra.mxu0 0
    %96 = vmatprep.subr.bf16.mxu0 0
    %97 = vmatpush1.bf16.msra.mxu0 0
    %98 = vmatprep.subr.bf16.mxu0 0
    %99 = vmatpush1.bf16.msra.mxu0 0
    %100 = vmatprep.subr.bf16.mxu0 0
    %101 = vmatpush1.bf16.msra.mxu0 0
    %102 = vmatprep.subr.bf16.mxu0 0
    %103 = vmatpush1.bf16.msra.mxu0 0
    %104 = vmatprep.mubr.bf16.mxu0 0
    %105 = vmatmul.mubr.bf16.gmra.mrb[0].mxu0 %v70
    %v106 = vpop.f32.mrb[0].mxu0
    %v107 = vadd.f32 0.0, %v106
    %v108 = vpop.f32.mrb[0].mxu0
    %v109 = vpop.f32.mrb[0].mxu0
    %v110 = vadd.f32 0.0, %v109
    %v111 = vpop.f32.mrb[0].mxu0
    %112 = vdwg.mxu0
    %v113 = vadd.f32 %v51, %v107
    %v114 = vadd.f32 %v52, %v110
    %vm115 = vcmask 261120
    %116 = vst.msk [vmem:[#allocation2] sm:$0xff] %vm115, %v113
    %117 = vst.msk [vmem:[#allocation2 + $0x8] sm:$0xff] %vm115, %v114
    // Predicated region
    $region26: #{tpu_custom_call.1} parent=1 // pred_check
      %p118 = pneg %p44
    $region27: #{tpu_custom_call.1} parent=1 // pred_check_branch
      %120 = sbr.rel (%p118) target = $region29
    $region28: #{tpu_custom_call.1} parent=1 // pred_region
      %v121 = vld [vmem:[#allocation2] sm:$0xff]
      %v122 = vld [vmem:[#allocation2 + $0x8] sm:$0xff]
      %v123 = vld [vmem:[%s2] sm:$0x1]
      %v125 = vlaneseq
      %v126 = vshrl.u32 %v125, 7
      %v127 = vsub.s32 0, %v126
      %v128 = vrot.slane %v123, %v127
      %v130 = vadd.f32 %v121, %v128
      %v131 = vadd.f32 %v122, %v128
      %132 = vst.msk [vmem:[#allocation8] sm:$0xff] %vm115, %v130
      %133 = vst.msk [vmem:[#allocation8 + $0x8] sm:$0xff] %vm115, %v131
    $region29: #{tpu_custom_call.1} parent=1 // pred_fallthru
      _
    // Predicated region
    $region30: #{tpu_custom_call.1} parent=1 // pred_check
      _
    $region31: #{tpu_custom_call.1} parent=1 // pred_check_branch
      %135 = sbr.rel (0) target = $region33
    $region32: #{tpu_custom_call.1} parent=1 // pred_region
      %s137 = ssub.s32 256, 256
      %138 = vsyncadd [#allocation5], %s137
      %s139 = sshll.u32 [#allocation8], 4
      %s140 = int_to_ptr.vmem [resolvable:$true] %s139
      %145 = dma.vmem_to_hbm [thread:$0]  %s140, 256, %s3, [#allocation5], 128, 128, 8
    $region33: #{tpu_custom_call.1} parent=1 // pred_fallthru
      _
    // Predicated region
    $region34: #{tpu_custom_call.1} parent=1 // pred_check
      _
    $region35: #{tpu_custom_call.1} parent=1 // pred_check_branch
      %147 = sbr.rel (0) target = $region37
    $region36: #{tpu_custom_call.1} parent=1 // pred_region
      %148 = dma.done [#allocation5], 256
    $region37: #{tpu_custom_call.1} parent=1 // pred_fallthru
      _
    %149 = vsyncpa [#allocation4], 1
    %150 = vsyncpa [#allocation7], 1
    %151 = vsyncpa [#allocation5], 1

</llo_original>
